<compile_context>
chip_gen: v5e
topology: v5e:2x2
jax: 0.10.0
libtpu: 0.0.40
codegen_flags: <defaults>
</compile_context>

<pallas_src>
import functools

import jax
import jax.numpy as jnp
from jax import lax
from jax.experimental import pallas as pl
from jax.experimental.pallas import tpu as pltpu


def _mha_kernel(x_ref, wqkv_ref, bqkv_ref, wo_ref, bo_ref, out_ref, attn_ref,
                *, nhead, d_k):
    """One batch element: fused QKV matmul, per-head softmax attention
    (statically unrolled over heads), single full-width output projection."""
    cdt = wqkv_ref.dtype                        # MXU compute dtype (bf16)
    d_model = nhead * d_k

    x = x_ref[0]                                # (seq, d_model) bf16

    # Fused Q/K/V projection: ONE (seq, d_model) @ (d_model, 3*d_model) matmul.
    # Column layout: [Q heads | K heads | V heads]; Q already carries 1/sqrt(d_k).
    qkv = jnp.dot(x, wqkv_ref[...],
                  preferred_element_type=jnp.float32) + bqkv_ref[...]

    ctx_cols = []
    for h in range(nhead):                      # static unroll (nhead is static)
        q = qkv[:, h * d_k:(h + 1) * d_k].astype(cdt)
        k = qkv[:, d_model + h * d_k:d_model + (h + 1) * d_k].astype(cdt)
        v = qkv[:, 2 * d_model + h * d_k:2 * d_model + (h + 1) * d_k].astype(cdt)

        # scores = (q / sqrt(d_k)) @ k^T : contract over d_k, no transpose.
        scores = lax.dot_general(q, k, (((1,), (1,)), ((), ())),
                                 preferred_element_type=jnp.float32)

        # Numerically-stable softmax in f32 (exact reciprocal: rows sum to ~1).
        s_max = jnp.max(scores, axis=-1, keepdims=True)
        e = jnp.exp(scores - s_max)
        attn = e * pl.reciprocal(jnp.sum(e, axis=-1, keepdims=True))
        attn_ref[0, h] = attn.astype(attn_ref.dtype)

        # context_h = attn_h @ v_h  (f32 accumulation)
        ctx_cols.append(jnp.dot(attn.astype(cdt), v,
                                preferred_element_type=jnp.float32))

    # Assemble (seq, d_model) context and run ONE full-width output projection.
    ctx = jnp.concatenate(ctx_cols, axis=-1).astype(cdt)
    out = jnp.dot(ctx, wo_ref[...], preferred_element_type=jnp.float32)
    out_ref[0] = (out + bo_ref[...]).astype(out_ref.dtype)


@functools.partial(jax.jit,
                   static_argnames=("nhead", "compute_dtype", "attn_dtype"))
def self_attention(x, wq, bq, wk, bk, wv, bv, wo, bo, *, nhead,
                   compute_dtype=jnp.bfloat16, attn_dtype=jnp.bfloat16):
    """x: (batch, seq, d_model). Weights stored as (in, out) = torch weight.T,
    biases as (out,). Returns (out, attn) like the PyTorch module."""
    batch, seq, d_model = x.shape
    assert d_model % nhead == 0
    d_k = d_model // nhead
    assert seq % 8 == 0, "seq must be a multiple of 8 (sublane); pad upstream"
    # TODO(synk): for real model sizes pad d_model / d_k to multiples of 128
    # lanes for unmasked vector stores; toy dims are left unpadded here.

    out_dtype = x.dtype
    scale = 1.0 / float(d_k) ** 0.5

    # Cast activations once in the wrapper (halves the x DMA / VMEM footprint).
    x_c = x.astype(compute_dtype)

    # Fuse QKV weights into one (d_model, 3*d_model) slab; fold the 1/sqrt(d_k)
    # scale into the Q columns / Q bias so the kernel never touches it.
    wqkv = jnp.concatenate([wq * scale, wk, wv], axis=1).astype(compute_dtype)
    bqkv = jnp.concatenate([bq * scale, bk, bv]).reshape(1, 3 * d_model)
    bqkv = bqkv.astype(jnp.float32)
    wo_c = wo.astype(compute_dtype)
    bo_2d = bo.reshape(1, d_model).astype(jnp.float32)

    c_it = jnp.dtype(compute_dtype).itemsize
    a_it = jnp.dtype(attn_dtype).itemsize
    o_it = jnp.dtype(out_dtype).itemsize

    # VMEM budget: pipeline blocks (double-buffered) + resident weights + the
    # in-kernel f32 temporaries (qkv, per-head seq^2 softmax, context).
    need = (2 * seq * d_model * c_it                 # x block (x2 buffers)
            + 3 * d_model * d_model * c_it           # wqkv (resident)
            + d_model * d_model * c_it               # wo (resident)
            + 4 * d_model * 4                        # biases
            + 2 * seq * d_model * o_it               # out block (x2)
            + 2 * nhead * seq * seq * a_it           # attn block (x2)
            + seq * 3 * d_model * 4                  # qkv f32 temp
            + 3 * seq * seq * 4                      # scores / exp / attn temps
            + 2 * seq * d_model * 4)                 # context columns + cast
    try:
        vmem_cap = int(pltpu.get_tpu_info().vmem_capacity_bytes)
    except Exception:
        vmem_cap = 64 * 1024 * 1024                  # conservative fallback
    vmem_limit = int(min(int(0.75 * vmem_cap),
                         max(32 * 1024 * 1024, int(1.25 * need))))

    flops = int(batch * (2 * seq * d_model * 3 * d_model    # fused QKV proj
                         + 2 * seq * seq * d_model          # scores (all heads)
                         + 2 * seq * seq * d_model          # attn @ v
                         + 2 * seq * d_model * d_model))    # output proj
    bytes_accessed = int(batch * seq * d_model * (c_it + o_it)      # x + out
                         + 4 * d_model * d_model * c_it             # weights
                         + 4 * d_model * 4                          # biases
                         + batch * nhead * seq * seq * a_it)        # attn

    kernel = functools.partial(_mha_kernel, nhead=nhead, d_k=d_k)

    out, attn = pl.pallas_call(
        kernel,
        out_shape=(jax.ShapeDtypeStruct((batch, seq, d_model), out_dtype),
                   jax.ShapeDtypeStruct((batch, nhead, seq, seq), attn_dtype)),
        grid_spec=pltpu.PrefetchScalarGridSpec(
            num_scalar_prefetch=0,
            grid=(batch,),
            in_specs=[
                pl.BlockSpec((1, seq, d_model), lambda b: (b, 0, 0)),     # x
                pl.BlockSpec((d_model, 3 * d_model), lambda b: (0, 0)),   # Wqkv
                pl.BlockSpec((1, 3 * d_model), lambda b: (0, 0)),         # bqkv
                pl.BlockSpec((d_model, d_model), lambda b: (0, 0)),       # Wo
                pl.BlockSpec((1, d_model), lambda b: (0, 0)),             # bo
            ],
            out_specs=[
                pl.BlockSpec((1, seq, d_model), lambda b: (b, 0, 0)),       # out
                pl.BlockSpec((1, nhead, seq, seq), lambda b: (b, 0, 0, 0)),  # attn
            ],
        ),
        compiler_params=pltpu.CompilerParams(
            dimension_semantics=("parallel",),
            vmem_limit_bytes=vmem_limit),
        cost_estimate=pl.CostEstimate(
            flops=flops,
            transcendentals=int(batch * nhead * seq * seq),
            bytes_accessed=bytes_accessed),
    )(x_c, wqkv, bqkv, wo_c, bo_2d)
    return out, attn


def init_params(key, d_model):
    """PyTorch nn.Linear-style init; weights stored as (in, out) = weight.T."""
    keys = jax.random.split(key, 8)
    bound = 1.0 / float(d_model) ** 0.5

    def w(k):
        return jax.random.uniform(k, (d_model, d_model), jnp.float32,
                                  -bound, bound)

    def b(k):
        return jax.random.uniform(k, (d_model,), jnp.float32, -bound, bound)

    return (w(keys[0]), b(keys[1]), w(keys[2]), b(keys[3]),
            w(keys[4]), b(keys[5]), w(keys[6]), b(keys[7]))


def ref_self_attention(x, wq, bq, wk, bk, wv, bv, wo, bo, nhead):
    """Pure-JAX f32 reference mirroring the PyTorch forward."""
    batch, seq, d_model = x.shape
    d_k = d_model // nhead

    def split(t):
        return t.reshape(batch, seq, nhead, d_k).transpose(0, 2, 1, 3)

    q, k, v = split(x @ wq + bq), split(x @ wk + bk), split(x @ wv + bv)
    scores = jnp.einsum("bhqd,bhkd->bhqk", q, k) / float(d_k) ** 0.5
    attn = jax.nn.softmax(scores, axis=-1)
    ctx = jnp.einsum("bhqk,bhkd->bhqd", attn, v)
    ctx = ctx.transpose(0, 2, 1, 3).reshape(batch, seq, d_model)
    return ctx @ wo + bo, attn


if __name__ == "__main__":
    key = jax.random.PRNGKey(0)
    batch, seq, d_model, nhead = 2, 8, 32, 4

    kx, kp = jax.random.split(key)
    x = jax.random.normal(kx, (batch, seq, d_model), jnp.float32)
    params = init_params(kp, d_model)

    out, attn = self_attention(x, *params, nhead=nhead,
                               compute_dtype=jnp.bfloat16,
                               attn_dtype=jnp.bfloat16)
    jax.block_until_ready((out, attn))

    ref_out, ref_attn = ref_self_attention(x, *params, nhead)
    # bf16 MXU inputs with f32 accumulation (and bf16 attn output) ->
    # loosened tolerances vs the f32 reference.
    assert jnp.allclose(attn.astype(jnp.float32), ref_attn,
                        atol=2e-2, rtol=2e-2), "attn mismatch"
    assert jnp.allclose(out, ref_out, atol=5e-2, rtol=5e-2), "out mismatch"

    print("KERNEL_OK")
</pallas_src>

<mosaic_0001>
module attributes {stable_mosaic.version = 11 : i64} {
  func.func @_mha_kernel(%arg0: i32, %arg1: memref<1x8x32xbf16, #tpu.memory_space<vmem>>, %arg2: memref<32x96xbf16, #tpu.memory_space<vmem>>, %arg3: memref<1x96xf32, #tpu.memory_space<vmem>>, %arg4: memref<32x32xbf16, #tpu.memory_space<vmem>>, %arg5: memref<1x32xf32, #tpu.memory_space<vmem>>, %arg6: memref<1x8x32xf32, #tpu.memory_space<vmem>>, %arg7: memref<1x4x8x8xbf16, #tpu.memory_space<vmem>>) attributes {dimension_semantics = [#tpu.dimension_semantics<parallel>], iteration_bounds = array<i64: 2>, scalar_prefetch = 0 : i64, scratch_operands = 0 : i64, tpu.core_type = #tpu.core_type<tc>, window_params = [{transform_indices = @transform_0, window_bounds = array<i64: 1, 8, 32>}, {pipeline_mode = #tpu.pipeline_mode<synchronous>, transform_indices = @transform_1, window_bounds = array<i64: 32, 96>}, {pipeline_mode = #tpu.pipeline_mode<synchronous>, transform_indices = @transform_2, window_bounds = array<i64: 1, 96>}, {pipeline_mode = #tpu.pipeline_mode<synchronous>, transform_indices = @transform_3, window_bounds = array<i64: 32, 32>}, {pipeline_mode = #tpu.pipeline_mode<synchronous>, transform_indices = @transform_4, window_bounds = array<i64: 1, 32>}, {transform_indices = @transform_5, window_bounds = array<i64: 1, 8, 32>}, {transform_indices = @transform_6, window_bounds = array<i64: 1, 4, 8, 8>}]} {
    %c0 = arith.constant 0 : index
    %c0_0 = arith.constant 0 : index
    %c0_1 = arith.constant 0 : index
    %0 = vector.load %arg1[%c0, %c0_0, %c0_1] : memref<1x8x32xbf16, #tpu.memory_space<vmem>>, vector<1x8x32xbf16>
    %1 = vector.shape_cast %0 : vector<1x8x32xbf16> to vector<8x32xbf16>
    %c0_2 = arith.constant 0 : index
    %c0_3 = arith.constant 0 : index
    %2 = vector.load %arg2[%c0_2, %c0_3] : memref<32x96xbf16, #tpu.memory_space<vmem>>, vector<32x96xbf16>
    %cst = arith.constant dense<0.000000e+00> : vector<8x96xf32>
    %3 = tpu.matmul %1, %2, %cst {dimension_numbers = #tpu.dot_dimension_numbers<[1], [0], [0], [1], [0, 0, 1, 1], [], []>} : vector<8x32xbf16>, vector<32x96xbf16>, vector<8x96xf32> -> vector<8x96xf32>
    %c0_4 = arith.constant 0 : index
    %c0_5 = arith.constant 0 : index
    %4 = vector.load %arg3[%c0_4, %c0_5] : memref<1x96xf32, #tpu.memory_space<vmem>>, vector<1x96xf32>
    %5 = vector.broadcast %4 : vector<1x96xf32> to vector<8x96xf32>
    %6 = arith.addf %3, %5 : vector<8x96xf32>
    %7 = vector.extract_strided_slice %6 {offsets = [0, 0], sizes = [8, 8], strides = [1, 1]} : vector<8x96xf32> to vector<8x8xf32>
    %8 = arith.truncf %7 : vector<8x8xf32> to vector<8x8xbf16>
    %9 = vector.extract_strided_slice %6 {offsets = [0, 32], sizes = [8, 8], strides = [1, 1]} : vector<8x96xf32> to vector<8x8xf32>
    %10 = arith.truncf %9 : vector<8x8xf32> to vector<8x8xbf16>
    %11 = vector.extract_strided_slice %6 {offsets = [0, 64], sizes = [8, 8], strides = [1, 1]} : vector<8x96xf32> to vector<8x8xf32>
    %12 = arith.truncf %11 : vector<8x8xf32> to vector<8x8xbf16>
    %cst_6 = arith.constant dense<0.000000e+00> : vector<8x8xf32>
    %13 = tpu.matmul %8, %10, %cst_6 {dimension_numbers = #tpu.dot_dimension_numbers<[1], [1], [0], [0], [0, 0, 1, 0], [], []>} : vector<8x8xbf16>, vector<8x8xbf16>, vector<8x8xf32> -> vector<8x8xf32>
    %cst_7 = arith.constant dense<0xFF800000> : vector<8xf32>
    %14 = vector.multi_reduction <maximumf>, %13, %cst_7 [1] : vector<8x8xf32> to vector<8xf32>
    %15 = vector.shape_cast %14 : vector<8xf32> to vector<8x1xf32>
    %16 = vector.broadcast %15 : vector<8x1xf32> to vector<8x8xf32>
    %17 = arith.subf %13, %16 : vector<8x8xf32>
    %18 = math.exp %17 : vector<8x8xf32>
    %cst_8 = arith.constant dense<0.000000e+00> : vector<8xf32>
    %19 = vector.multi_reduction <add>, %18, %cst_8 [1] : vector<8x8xf32> to vector<8xf32>
    %20 = vector.shape_cast %19 : vector<8xf32> to vector<8x1xf32>
    %21 = tpu.reciprocal %20 : vector<8x1xf32> -> vector<8x1xf32>
    %22 = vector.broadcast %21 : vector<8x1xf32> to vector<8x8xf32>
    %23 = arith.mulf %18, %22 : vector<8x8xf32>
    %24 = arith.truncf %23 : vector<8x8xf32> to vector<8x8xbf16>
    %c0_9 = arith.constant 0 : index
    %c0_10 = arith.constant 0 : index
    %c0_11 = arith.constant 0 : index
    %c0_12 = arith.constant 0 : index
    %25 = vector.load %arg7[%c0_9, %c0_10, %c0_11, %c0_12] : memref<1x4x8x8xbf16, #tpu.memory_space<vmem>>, vector<1x1x8x8xbf16>
    %26 = vector.shape_cast %25 : vector<1x1x8x8xbf16> to vector<8x8xbf16>
    %27 = vector.shape_cast %24 : vector<8x8xbf16> to vector<1x1x8x8xbf16>
    tpu.vector_store %arg7[%c0_9, %c0_10, %c0_11, %c0_12], %27 {strides = array<i32>} : memref<1x4x8x8xbf16, #tpu.memory_space<vmem>>, vector<1x1x8x8xbf16>,
    %28 = arith.truncf %23 : vector<8x8xf32> to vector<8x8xbf16>
    %cst_13 = arith.constant dense<0.000000e+00> : vector<8x8xf32>
    %29 = tpu.matmul %28, %12, %cst_13 {dimension_numbers = #tpu.dot_dimension_numbers<[1], [0], [0], [1], [0, 0, 1, 1], [], []>} : vector<8x8xbf16>, vector<8x8xbf16>, vector<8x8xf32> -> vector<8x8xf32>
    %30 = vector.extract_strided_slice %6 {offsets = [0, 8], sizes = [8, 8], strides = [1, 1]} : vector<8x96xf32> to vector<8x8xf32>
    %31 = arith.truncf %30 : vector<8x8xf32> to vector<8x8xbf16>
    %32 = vector.extract_strided_slice %6 {offsets = [0, 40], sizes = [8, 8], strides = [1, 1]} : vector<8x96xf32> to vector<8x8xf32>
    %33 = arith.truncf %32 : vector<8x8xf32> to vector<8x8xbf16>
    %34 = vector.extract_strided_slice %6 {offsets = [0, 72], sizes = [8, 8], strides = [1, 1]} : vector<8x96xf32> to vector<8x8xf32>
    %35 = arith.truncf %34 : vector<8x8xf32> to vector<8x8xbf16>
    %cst_14 = arith.constant dense<0.000000e+00> : vector<8x8xf32>
    %36 = tpu.matmul %31, %33, %cst_14 {dimension_numbers = #tpu.dot_dimension_numbers<[1], [1], [0], [0], [0, 0, 1, 0], [], []>} : vector<8x8xbf16>, vector<8x8xbf16>, vector<8x8xf32> -> vector<8x8xf32>
    %cst_15 = arith.constant dense<0xFF800000> : vector<8xf32>
    %37 = vector.multi_reduction <maximumf>, %36, %cst_15 [1] : vector<8x8xf32> to vector<8xf32>
    %38 = vector.shape_cast %37 : vector<8xf32> to vector<8x1xf32>
    %39 = vector.broadcast %38 : vector<8x1xf32> to vector<8x8xf32>
    %40 = arith.subf %36, %39 : vector<8x8xf32>
    %41 = math.exp %40 : vector<8x8xf32>
    %cst_16 = arith.constant dense<0.000000e+00> : vector<8xf32>
    %42 = vector.multi_reduction <add>, %41, %cst_16 [1] : vector<8x8xf32> to vector<8xf32>
    %43 = vector.shape_cast %42 : vector<8xf32> to vector<8x1xf32>
    %44 = tpu.reciprocal %43 : vector<8x1xf32> -> vector<8x1xf32>
    %45 = vector.broadcast %44 : vector<8x1xf32> to vector<8x8xf32>
    %46 = arith.mulf %41, %45 : vector<8x8xf32>
    %47 = arith.truncf %46 : vector<8x8xf32> to vector<8x8xbf16>
    %c0_17 = arith.constant 0 : index
    %c1 = arith.constant 1 : index
    %c0_18 = arith.constant 0 : index
    %c0_19 = arith.constant 0 : index
    %48 = vector.load %arg7[%c0_17, %c1, %c0_18, %c0_19] : memref<1x4x8x8xbf16, #tpu.memory_space<vmem>>, vector<1x1x8x8xbf16>
    %49 = vector.shape_cast %48 : vector<1x1x8x8xbf16> to vector<8x8xbf16>
    %50 = vector.shape_cast %47 : vector<8x8xbf16> to vector<1x1x8x8xbf16>
    tpu.vector_store %arg7[%c0_17, %c1, %c0_18, %c0_19], %50 {strides = array<i32>} : memref<1x4x8x8xbf16, #tpu.memory_space<vmem>>, vector<1x1x8x8xbf16>,
    %51 = arith.truncf %46 : vector<8x8xf32> to vector<8x8xbf16>
    %cst_20 = arith.constant dense<0.000000e+00> : vector<8x8xf32>
    %52 = tpu.matmul %51, %35, %cst_20 {dimension_numbers = #tpu.dot_dimension_numbers<[1], [0], [0], [1], [0, 0, 1, 1], [], []>} : vector<8x8xbf16>, vector<8x8xbf16>, vector<8x8xf32> -> vector<8x8xf32>
    %53 = vector.extract_strided_slice %6 {offsets = [0, 16], sizes = [8, 8], strides = [1, 1]} : vector<8x96xf32> to vector<8x8xf32>
    %54 = arith.truncf %53 : vector<8x8xf32> to vector<8x8xbf16>
    %55 = vector.extract_strided_slice %6 {offsets = [0, 48], sizes = [8, 8], strides = [1, 1]} : vector<8x96xf32> to vector<8x8xf32>
    %56 = arith.truncf %55 : vector<8x8xf32> to vector<8x8xbf16>
    %57 = vector.extract_strided_slice %6 {offsets = [0, 80], sizes = [8, 8], strides = [1, 1]} : vector<8x96xf32> to vector<8x8xf32>
    %58 = arith.truncf %57 : vector<8x8xf32> to vector<8x8xbf16>
    %cst_21 = arith.constant dense<0.000000e+00> : vector<8x8xf32>
    %59 = tpu.matmul %54, %56, %cst_21 {dimension_numbers = #tpu.dot_dimension_numbers<[1], [1], [0], [0], [0, 0, 1, 0], [], []>} : vector<8x8xbf16>, vector<8x8xbf16>, vector<8x8xf32> -> vector<8x8xf32>
    %cst_22 = arith.constant dense<0xFF800000> : vector<8xf32>
    %60 = vector.multi_reduction <maximumf>, %59, %cst_22 [1] : vector<8x8xf32> to vector<8xf32>
    %61 = vector.shape_cast %60 : vector<8xf32> to vector<8x1xf32>
    %62 = vector.broadcast %61 : vector<8x1xf32> to vector<8x8xf32>
    %63 = arith.subf %59, %62 : vector<8x8xf32>
    %64 = math.exp %63 : vector<8x8xf32>
    %cst_23 = arith.constant dense<0.000000e+00> : vector<8xf32>
    %65 = vector.multi_reduction <add>, %64, %cst_23 [1] : vector<8x8xf32> to vector<8xf32>
    %66 = vector.shape_cast %65 : vector<8xf32> to vector<8x1xf32>
    %67 = tpu.reciprocal %66 : vector<8x1xf32> -> vector<8x1xf32>
    %68 = vector.broadcast %67 : vector<8x1xf32> to vector<8x8xf32>
    %69 = arith.mulf %64, %68 : vector<8x8xf32>
    %70 = arith.truncf %69 : vector<8x8xf32> to vector<8x8xbf16>
    %c0_24 = arith.constant 0 : index
    %c2 = arith.constant 2 : index
    %c0_25 = arith.constant 0 : index
    %c0_26 = arith.constant 0 : index
    %71 = vector.load %arg7[%c0_24, %c2, %c0_25, %c0_26] : memref<1x4x8x8xbf16, #tpu.memory_space<vmem>>, vector<1x1x8x8xbf16>
    %72 = vector.shape_cast %71 : vector<1x1x8x8xbf16> to vector<8x8xbf16>
    %73 = vector.shape_cast %70 : vector<8x8xbf16> to vector<1x1x8x8xbf16>
    tpu.vector_store %arg7[%c0_24, %c2, %c0_25, %c0_26], %73 {strides = array<i32>} : memref<1x4x8x8xbf16, #tpu.memory_space<vmem>>, vector<1x1x8x8xbf16>,
    %74 = arith.truncf %69 : vector<8x8xf32> to vector<8x8xbf16>
    %cst_27 = arith.constant dense<0.000000e+00> : vector<8x8xf32>
    %75 = tpu.matmul %74, %58, %cst_27 {dimension_numbers = #tpu.dot_dimension_numbers<[1], [0], [0], [1], [0, 0, 1, 1], [], []>} : vector<8x8xbf16>, vector<8x8xbf16>, vector<8x8xf32> -> vector<8x8xf32>
    %76 = vector.extract_strided_slice %6 {offsets = [0, 24], sizes = [8, 8], strides = [1, 1]} : vector<8x96xf32> to vector<8x8xf32>
    %77 = arith.truncf %76 : vector<8x8xf32> to vector<8x8xbf16>
    %78 = vector.extract_strided_slice %6 {offsets = [0, 56], sizes = [8, 8], strides = [1, 1]} : vector<8x96xf32> to vector<8x8xf32>
    %79 = arith.truncf %78 : vector<8x8xf32> to vector<8x8xbf16>
    %80 = vector.extract_strided_slice %6 {offsets = [0, 88], sizes = [8, 8], strides = [1, 1]} : vector<8x96xf32> to vector<8x8xf32>
    %81 = arith.truncf %80 : vector<8x8xf32> to vector<8x8xbf16>
    %cst_28 = arith.constant dense<0.000000e+00> : vector<8x8xf32>
    %82 = tpu.matmul %77, %79, %cst_28 {dimension_numbers = #tpu.dot_dimension_numbers<[1], [1], [0], [0], [0, 0, 1, 0], [], []>} : vector<8x8xbf16>, vector<8x8xbf16>, vector<8x8xf32> -> vector<8x8xf32>
    %cst_29 = arith.constant dense<0xFF800000> : vector<8xf32>
    %83 = vector.multi_reduction <maximumf>, %82, %cst_29 [1] : vector<8x8xf32> to vector<8xf32>
    %84 = vector.shape_cast %83 : vector<8xf32> to vector<8x1xf32>
    %85 = vector.broadcast %84 : vector<8x1xf32> to vector<8x8xf32>
    %86 = arith.subf %82, %85 : vector<8x8xf32>
    %87 = math.exp %86 : vector<8x8xf32>
    %cst_30 = arith.constant dense<0.000000e+00> : vector<8xf32>
    %88 = vector.multi_reduction <add>, %87, %cst_30 [1] : vector<8x8xf32> to vector<8xf32>
    %89 = vector.shape_cast %88 : vector<8xf32> to vector<8x1xf32>
    %90 = tpu.reciprocal %89 : vector<8x1xf32> -> vector<8x1xf32>
    %91 = vector.broadcast %90 : vector<8x1xf32> to vector<8x8xf32>
    %92 = arith.mulf %87, %91 : vector<8x8xf32>
    %93 = arith.truncf %92 : vector<8x8xf32> to vector<8x8xbf16>
    %c0_31 = arith.constant 0 : index
    %c3 = arith.constant 3 : index
    %c0_32 = arith.constant 0 : index
    %c0_33 = arith.constant 0 : index
    %94 = vector.load %arg7[%c0_31, %c3, %c0_32, %c0_33] : memref<1x4x8x8xbf16, #tpu.memory_space<vmem>>, vector<1x1x8x8xbf16>
    %95 = vector.shape_cast %94 : vector<1x1x8x8xbf16> to vector<8x8xbf16>
    %96 = vector.shape_cast %93 : vector<8x8xbf16> to vector<1x1x8x8xbf16>
    tpu.vector_store %arg7[%c0_31, %c3, %c0_32, %c0_33], %96 {strides = array<i32>} : memref<1x4x8x8xbf16, #tpu.memory_space<vmem>>, vector<1x1x8x8xbf16>,
    %97 = arith.truncf %92 : vector<8x8xf32> to vector<8x8xbf16>
    %cst_34 = arith.constant dense<0.000000e+00> : vector<8x8xf32>
    %98 = tpu.matmul %97, %81, %cst_34 {dimension_numbers = #tpu.dot_dimension_numbers<[1], [0], [0], [1], [0, 0, 1, 1], [], []>} : vector<8x8xbf16>, vector<8x8xbf16>, vector<8x8xf32> -> vector<8x8xf32>
    %99 = tpu.concatenate %29, %52, %75, %98 in 1 : vector<8x8xf32>, vector<8x8xf32>, vector<8x8xf32>, vector<8x8xf32> -> vector<8x32xf32>
    %100 = arith.truncf %99 : vector<8x32xf32> to vector<8x32xbf16>
    %c0_35 = arith.constant 0 : index
    %c0_36 = arith.constant 0 : index
    %101 = vector.load %arg4[%c0_35, %c0_36] : memref<32x32xbf16, #tpu.memory_space<vmem>>, vector<32x32xbf16>
    %cst_37 = arith.constant dense<0.000000e+00> : vector<8x32xf32>
    %102 = tpu.matmul %100, %101, %cst_37 {dimension_numbers = #tpu.dot_dimension_numbers<[1], [0], [0], [1], [0, 0, 1, 1], [], []>} : vector<8x32xbf16>, vector<32x32xbf16>, vector<8x32xf32> -> vector<8x32xf32>
    %c0_38 = arith.constant 0 : index
    %c0_39 = arith.constant 0 : index
    %103 = vector.load %arg5[%c0_38, %c0_39] : memref<1x32xf32, #tpu.memory_space<vmem>>, vector<1x32xf32>
    %104 = vector.broadcast %103 : vector<1x32xf32> to vector<8x32xf32>
    %105 = arith.addf %102, %104 : vector<8x32xf32>
    %c0_40 = arith.constant 0 : index
    %c0_41 = arith.constant 0 : index
    %c0_42 = arith.constant 0 : index
    %106 = vector.load %arg6[%c0_40, %c0_41, %c0_42] : memref<1x8x32xf32, #tpu.memory_space<vmem>>, vector<1x8x32xf32>
    %107 = vector.shape_cast %106 : vector<1x8x32xf32> to vector<8x32xf32>
    %108 = vector.shape_cast %105 : vector<8x32xf32> to vector<1x8x32xf32>
    tpu.vector_store %arg6[%c0_40, %c0_41, %c0_42], %108 {strides = array<i32>} : memref<1x8x32xf32, #tpu.memory_space<vmem>>, vector<1x8x32xf32>,
    return
  }
  func.func @transform_0(%arg0: i32) -> (i32, i32, i32) {
    %c0_i32 = arith.constant 0 : i32
    %c0_i32_0 = arith.constant 0 : i32
    %c0_i32_1 = arith.constant 0 : i32
    return %arg0, %c0_i32, %c0_i32_0 : i32, i32, i32
  }
  func.func @transform_1(%arg0: i32) -> (i32, i32) {
    %c0_i32 = arith.constant 0 : i32
    %c0_i32_0 = arith.constant 0 : i32
    %c0_i32_1 = arith.constant 0 : i32
    return %c0_i32, %c0_i32_0 : i32, i32
  }
  func.func @transform_2(%arg0: i32) -> (i32, i32) {
    %c0_i32 = arith.constant 0 : i32
    %c0_i32_0 = arith.constant 0 : i32
    %c0_i32_1 = arith.constant 0 : i32
    return %c0_i32, %c0_i32_0 : i32, i32
  }
  func.func @transform_3(%arg0: i32) -> (i32, i32) {
    %c0_i32 = arith.constant 0 : i32
    %c0_i32_0 = arith.constant 0 : i32
    %c0_i32_1 = arith.constant 0 : i32
    return %c0_i32, %c0_i32_0 : i32, i32
  }
  func.func @transform_4(%arg0: i32) -> (i32, i32) {
    %c0_i32 = arith.constant 0 : i32
    %c0_i32_0 = arith.constant 0 : i32
    %c0_i32_1 = arith.constant 0 : i32
    return %c0_i32, %c0_i32_0 : i32, i32
  }
  func.func @transform_5(%arg0: i32) -> (i32, i32, i32) {
    %c0_i32 = arith.constant 0 : i32
    %c0_i32_0 = arith.constant 0 : i32
    %c0_i32_1 = arith.constant 0 : i32
    return %arg0, %c0_i32, %c0_i32_0 : i32, i32, i32
  }
  func.func @transform_6(%arg0: i32) -> (i32, i32, i32, i32) {
    %c0_i32 = arith.constant 0 : i32
    %c0_i32_0 = arith.constant 0 : i32
    %c0_i32_1 = arith.constant 0 : i32
    %c0_i32_2 = arith.constant 0 : i32
    return %arg0, %c0_i32, %c0_i32_0, %c0_i32_1 : i32, i32, i32, i32
  }
}

</mosaic_0001>

<llo_original>
// kernel: self_attention.1
$region0: #{self_attention.1}
  #allocation0 [shape = 'u32[]', space=smem, size = 0x4, offset = 0x4, fixed_abs, tag = 'smem constant byte address 0x4 - core index']
  #allocation1 [shape = 'u32[72,128]{1,0:T(1,128)}', space=vmem, size = 0x9000, scoped, tag = 'internal scratch']
  %s0 = inlined_call_operand.vmem [shape: bf16[2,8,32], index: 0, kind: input, shape index: {}]
  %s1 = inlined_call_operand.vmem [shape: bf16[32,96], index: 1, kind: input, shape index: {}]
  %s2 = inlined_call_operand.vmem [shape: f32[1,96], index: 2, kind: input, shape index: {}]
  %s3 = inlined_call_operand.vmem [shape: bf16[32,32], index: 3, kind: input, shape index: {}]
  %s4 = inlined_call_operand.vmem [shape: f32[1,32], index: 4, kind: input, shape index: {}]
  %s5 = inlined_call_operand.hbm [shape: f32[2,8,32], index: 5, kind: output, shape index: {0}]
  %s6 = inlined_call_operand.hbm [shape: bf16[2,4,8,8], index: 6, kind: output, shape index: {1}]
  %7 = xla_tuple %s5, %s6
  %s8 = sld [smem:[#allocation0]]
  $region61: #{self_attention.1} parent=0
    _
  %s10 = ssub.s32 1, %s8
  %s11 = scalar_select 0, %s10, %s8
  $region1: #{self_attention.1} parent=0
    #allocation2 [shape = 'u8[8192]{0}', space=vmem, size = 0x2000, scoped, tag = 'output window, operand 0']
    #allocation3 [shape = 's32[2]{0}', space=sflag, size = 0x8, scoped, tag = 'scoped memory for self_attention.1']
    #allocation4 [shape = 'u8[16384]{0}', space=vmem, size = 0x4000, scoped, tag = 'output window, operand 1']
    #allocation5 [shape = 's32[2]{0}', space=sflag, size = 0x8, scoped, tag = 'scoped memory for self_attention.1']
    %12 = vsyncpa [#allocation3], 0
    %s13 = scalar_lea.sflag [#allocation3], 1
    %14 = vsyncpa %s13, 0
    %15 = vsyncpa [#allocation5], 0
    %s16 = scalar_lea.sflag [#allocation5], 1
    %17 = vsyncpa %s16, 0
    loop: start=0, step=1, limit=4
    $region2: #{self_attention.1} parent=1 // loop_pre_header
      _
    $region3: #{self_attention.1} parent=1 // loop_header
      %s19 = sphi 0, %s23
      %p20 = scmp.ge.s32.totalorder %s19, 4
      %s29 = sphi 0, %s31
      %s32 = sphi 0, %s29
      %s33 = sphi 0, %s32
      %s49 = sphi 0, %s33
      %s53 = sphi 0, %s53
      %s55 = sphi 0, %s53
      %s56 = sphi 0, %s55
      %s70 = sphi 0, %s56
      %s74 = sphi 0, %s74
      %s76 = sphi 0, %s74
      %s77 = sphi 0, %s76
      %s91 = sphi 0, %s77
      %s95 = sphi 0, %s95
      %s97 = sphi 0, %s95
      %s98 = sphi 0, %s97
      %s112 = sphi 0, %s98
      %s116 = sphi 0, %s116
      %s118 = sphi 0, %s116
      %s119 = sphi 0, %s118
      %s133 = sphi 0, %s119
      %s139 = sphi 0, %s141
      %s142 = sphi 0, %s139
      %s143 = sphi 0, %s142
      %s159 = sphi 0, %s143
      %s165 = sphi 0, %s167
      %s168 = sphi 0, %s165
      %s169 = sphi 0, %s168
      %s185 = sphi 0, %s169
    $region4: #{self_attention.1} parent=1 // loop_header_branch
      %22 = sbr.rel (%p20) target = $region8
    $region5: #{self_attention.1} parent=1 // loop_body
      %s24 = ssub.s32 %s19, 1
      %s25 = ssub.s32 %s19, 2
      %s26 = sadd.s32 %s19, 1
      %s27 = ssub.s32 %s19, %s26
      %p28 = scmp.eq.s32.totalorder %s27, 0
      %s30 = sadd.s32 %s29, 1
      %s31 = scalar_select %p28, %s29, %s30
      %p34 = pneg %p28
      %p35 = scmp.eq.s32.totalorder %s19, 1
      %p36 = por %p34, %p35
      %p37 = scmp.ne.s32.totalorder %s29, %s32
      %p38 = scmp.eq.s32.totalorder %s19, 0
      %p39 = por %p37, %p38
      %p40 = scmp.ne.s32.totalorder %s29, %s32
      %p41 = scmp.eq.s32.totalorder %s24, 1
      %p42 = por %p40, %p41
      %p43 = scmp.ne.s32.totalorder %s32, %s33
      %p44 = scmp.eq.s32.totalorder %s24, 0
      %p45 = por %p43, %p44
      %p46 = scmp.ne.s32.totalorder %s32, %s33
      %p47 = scmp.eq.s32.totalorder %s25, 1
      %p48 = por %p46, %p47
      %p50 = scmp.ne.s32.totalorder %s33, %s49
      %p51 = scmp.eq.s32.totalorder %s25, 0
      %p52 = por %p50, %p51
      %s54 = sadd.s32 %s53, 1
      %p57 = scmp.eq.s32.totalorder %s19, 1
      %p58 = scmp.ne.s32.totalorder %s53, %s55
      %p59 = scmp.eq.s32.totalorder %s19, 0
      %p60 = por %p58, %p59
      %p61 = scmp.ne.s32.totalorder %s53, %s55
      %p62 = scmp.eq.s32.totalorder %s24, 1
      %p63 = por %p61, %p62
      %p64 = scmp.ne.s32.totalorder %s55, %s56
      %p65 = scmp.eq.s32.totalorder %s24, 0
      %p66 = por %p64, %p65
      %p67 = scmp.ne.s32.totalorder %s55, %s56
      %p68 = scmp.eq.s32.totalorder %s25, 1
      %p69 = por %p67, %p68
      %p71 = scmp.ne.s32.totalorder %s56, %s70
      %p72 = scmp.eq.s32.totalorder %s25, 0
      %p73 = por %p71, %p72
      %s75 = sadd.s32 %s74, 1
      %p78 = scmp.eq.s32.totalorder %s19, 1
      %p79 = scmp.ne.s32.totalorder %s74, %s76
      %p80 = scmp.eq.s32.totalorder %s19, 0
      %p81 = por %p79, %p80
      %p82 = scmp.ne.s32.totalorder %s74, %s76
      %p83 = scmp.eq.s32.totalorder %s24, 1
      %p84 = por %p82, %p83
      %p85 = scmp.ne.s32.totalorder %s76, %s77
      %p86 = scmp.eq.s32.totalorder %s24, 0
      %p87 = por %p85, %p86
      %p88 = scmp.ne.s32.totalorder %s76, %s77
      %p89 = scmp.eq.s32.totalorder %s25, 1
      %p90 = por %p88, %p89
      %p92 = scmp.ne.s32.totalorder %s77, %s91
      %p93 = scmp.eq.s32.totalorder %s25, 0
      %p94 = por %p92, %p93
      %s96 = sadd.s32 %s95, 1
      %p99 = scmp.eq.s32.totalorder %s19, 1
      %p100 = scmp.ne.s32.totalorder %s95, %s97
      %p101 = scmp.eq.s32.totalorder %s19, 0
      %p102 = por %p100, %p101
      %p103 = scmp.ne.s32.totalorder %s95, %s97
      %p104 = scmp.eq.s32.totalorder %s24, 1
      %p105 = por %p103, %p104
      %p106 = scmp.ne.s32.totalorder %s97, %s98
      %p107 = scmp.eq.s32.totalorder %s24, 0
      %p108 = por %p106, %p107
      %p109 = scmp.ne.s32.totalorder %s97, %s98
      %p110 = scmp.eq.s32.totalorder %s25, 1
      %p111 = por %p109, %p110
      %p113 = scmp.ne.s32.totalorder %s98, %s112
      %p114 = scmp.eq.s32.totalorder %s25, 0
      %p115 = por %p113, %p114
      %s117 = sadd.s32 %s116, 1
      %p120 = scmp.eq.s32.totalorder %s19, 1
      %p121 = scmp.ne.s32.totalorder %s116, %s118
      %p122 = scmp.eq.s32.totalorder %s19, 0
      %p123 = por %p121, %p122
      %p124 = scmp.ne.s32.totalorder %s116, %s118
      %p125 = scmp.eq.s32.totalorder %s24, 1
      %p126 = por %p124, %p125
      %p127 = scmp.ne.s32.totalorder %s118, %s119
      %p128 = scmp.eq.s32.totalorder %s24, 0
      %p129 = por %p127, %p128
      %p130 = scmp.ne.s32.totalorder %s118, %s119
      %p131 = scmp.eq.s32.totalorder %s25, 1
      %p132 = por %p130, %p131
      %p134 = scmp.ne.s32.totalorder %s119, %s133
      %p135 = scmp.eq.s32.totalorder %s25, 0
      %p136 = por %p134, %p135
      %s137 = ssub.s32 %s19, %s26
      %p138 = scmp.eq.s32.totalorder %s137, 0
      %s140 = sadd.s32 %s139, 1
      %s141 = scalar_select %p138, %s139, %s140
      %p144 = pneg %p138
      %p145 = scmp.eq.s32.totalorder %s19, 1
      %p146 = por %p144, %p145
      %p147 = scmp.ne.s32.totalorder %s139, %s142
      %p148 = scmp.eq.s32.totalorder %s19, 0
      %p149 = por %p147, %p148
      %p150 = scmp.ne.s32.totalorder %s139, %s142
      %p151 = scmp.eq.s32.totalorder %s24, 1
      %p152 = por %p150, %p151
      %p153 = scmp.ne.s32.totalorder %s142, %s143
      %p154 = scmp.eq.s32.totalorder %s24, 0
      %p155 = por %p153, %p154
      %p156 = scmp.ne.s32.totalorder %s142, %s143
      %p157 = scmp.eq.s32.totalorder %s25, 1
      %p158 = por %p156, %p157
      %p160 = scmp.ne.s32.totalorder %s143, %s159
      %p161 = scmp.eq.s32.totalorder %s25, 0
      %p162 = por %p160, %p161
      %s163 = ssub.s32 %s19, %s26
      %p164 = scmp.eq.s32.totalorder %s163, 0
      %s166 = sadd.s32 %s165, 1
      %s167 = scalar_select %p164, %s165, %s166
      %p170 = pneg %p164
      %p171 = scmp.eq.s32.totalorder %s19, 1
      %p172 = por %p170, %p171
      %p173 = scmp.ne.s32.totalorder %s165, %s168
      %p174 = scmp.eq.s32.totalorder %s19, 0
      %p175 = por %p173, %p174
      %p176 = scmp.ne.s32.totalorder %s165, %s168
      %p177 = scmp.eq.s32.totalorder %s24, 1
      %p178 = por %p176, %p177
      %p179 = scmp.ne.s32.totalorder %s168, %s169
      %p180 = scmp.eq.s32.totalorder %s24, 0
      %p181 = por %p179, %p180
      %p182 = scmp.ne.s32.totalorder %s168, %s169
      %p183 = scmp.eq.s32.totalorder %s25, 1
      %p184 = por %p182, %p183
      %p186 = scmp.ne.s32.totalorder %s169, %s185
      %p187 = scmp.eq.s32.totalorder %s25, 0
      %p188 = por %p186, %p187
      %p189 = scmp.le.s32.totalorder 1, %s19
      %p190 = scmp.lt.s32.totalorder %s19, 3
      %p191 = pnand %p189, %p190
      %p192 = pneg %p191
      // Predicated region
      $region9: #{self_attention.1} parent=5 // pred_check
        _
      $region10: #{self_attention.1} parent=5 // pred_check_branch
        %194 = sbr.rel (%p191) target = $region12
      $region11: #{self_attention.1} parent=5 // pred_region
        %s195 = ssub.s32 %s19, 1
        // Predicated region
        $region13: #{self_attention.1} parent=11 // pred_check
          %p196 = pneg %p66
        $region14: #{self_attention.1} parent=11 // pred_check_branch
          %198 = sbr.rel (%p196) target = $region16
        $region15: #{self_attention.1} parent=11 // pred_region
          _
        $region16: #{self_attention.1} parent=11 // pred_fallthru
          _
        // Predicated region
        $region17: #{self_attention.1} parent=11 // pred_check
          %p199 = pneg %p87
        $region18: #{self_attention.1} parent=11 // pred_check_branch
          %201 = sbr.rel (%p199) target = $region20
        $region19: #{self_attention.1} parent=11 // pred_region
          _
        $region20: #{self_attention.1} parent=11 // pred_fallthru
          _
        // Predicated region
        $region21: #{self_attention.1} parent=11 // pred_check
          %p202 = pneg %p108
        $region22: #{self_attention.1} parent=11 // pred_check_branch
          %204 = sbr.rel (%p202) target = $region24
        $region23: #{self_attention.1} parent=11 // pred_region
          _
        $region24: #{self_attention.1} parent=11 // pred_fallthru
          _
        // Predicated region
        $region25: #{self_attention.1} parent=11 // pred_check
          %p205 = pneg %p129
        $region26: #{self_attention.1} parent=11 // pred_check_branch
          %207 = sbr.rel (%p205) target = $region28
        $region27: #{self_attention.1} parent=11 // pred_region
          _
        $region28: #{self_attention.1} parent=11 // pred_fallthru
          _
      $region12: #{self_attention.1} parent=5 // pred_fallthru
        _
      %p208 = scmp.lt.s32.totalorder %s19, 2
      // Predicated region
      $region29: #{self_attention.1} parent=5 // pred_check
        %p209 = pneg %p208
      $region30: #{self_attention.1} parent=5 // pred_check_branch
        %211 = sbr.rel (%p209) target = $region32
      $region31: #{self_attention.1} parent=5 // pred_region
        // Predicated region
        $region33: #{self_attention.1} parent=31 // pred_check
          %p212 = pneg %p39
        $region34: #{self_attention.1} parent=31 // pred_check_branch
          %214 = sbr.rel (%p212) target = $region36
        $region35: #{self_attention.1} parent=31 // pred_region
          %p215 = scmp.lt.s32.totalorder %s19, 1
          %s216 = scalar_select %p215, %s19, 1
          %s217 = smul.addr %s216, 4
          %s218 = scalar_lea.vmem %s0, %s217
        $region36: #{self_attention.1} parent=31 // pred_fallthru
          _
      $region32: #{self_attention.1} parent=5 // pred_fallthru
        _
      %p219 = scmp.le.s32.totalorder 1, %s19
      %p220 = scmp.lt.s32.totalorder %s19, 3
      %p221 = pnand %p219, %p220
      %p222 = pneg %p221
      // Predicated region
      $region37: #{self_attention.1} parent=5 // pred_check
        _
      $region38: #{self_attention.1} parent=5 // pred_check_branch
        %224 = sbr.rel (%p221) target = $region40
      $region39: #{self_attention.1} parent=5 // pred_region
        %s225 = ssub.s32 %s19, 1
        %p226 = scmp.lt.s32.totalorder %s24, 1
        %s227 = scalar_select %p226, %s24, 1
        %s228 = smul.addr %s227, 4
        %s229 = scalar_lea.vmem %s0, %s228
        %p230 = pneg %p45
        %p231 = pneg %p42
        %p232 = pneg %p66
        %p233 = pneg %p63
        %p234 = pneg %p87
        %p235 = pneg %p84
        %p236 = pneg %p108
        %p237 = pneg %p105
        %p238 = pneg %p129
        %p239 = pneg %p126
        %p240 = pneg %p155
        %p241 = pneg %p152
        %s242 = sand.u32 %s142, 1
        %s243 = scalar_lea.sflag [#allocation3], %s242
        %s244 = sand.u32 %s142, 1
        %s245 = smul.addr %s244, 8
        %s246 = scalar_lea.vmem [#allocation2], %s245
        %p247 = pneg %p181
        %p248 = pneg %p178
        %s249 = sand.u32 %s168, 1
        %s250 = scalar_lea.sflag [#allocation5], %s249
        %s251 = sand.u32 %s168, 1
        %s252 = smul.addr %s251, 16
        %s253 = scalar_lea.vmem [#allocation4], %s252
        %p254 = scmp.lt.s32.totalorder %s24, 1
        %s255 = scalar_select %p254, %s24, 1
        %s256 = smul.addr %s255, 4
        %s257 = scalar_lea.vmem %s0, %s256
        %v259 = vld [vmem:[%s257] sm:$0xf]
        %v260 = vld [vmem:[%s1] sm:$0xf]
        %v261 = vld [vmem:[%s1 + $0x4] sm:$0xf]
        %v262 = vld [vmem:[%s1 + $0x8] sm:$0xf]
        %v263 = vld [vmem:[%s1 + $0xc] sm:$0xf]
        %v264 = vld [vmem:[%s2] sm:$0x1]
        %v266 = vperm.slane %v264, 0
        %v272 = vunpack.c.l.b16 %v260
        %v273 = vunpack.c.l.b16 %v261
        %v274 = vunpack.c.l.b16 %v262
        %v275 = vunpack.c.l.b16 %v263
        %v276 = vpack.c.b16 %v273, %v272
        %v277 = vpack.c.b16 %v275, %v274
        %vm280 = vcmask 261120
        %v282 = vsel %vm280, %v259, 0
        %284 = vmatpush.bf16.msra.mxu0 0
        %285 = vmatpush.bf16.msra.mxu0 0
        %286 = vmatpush.bf16.msra.mxu0 0
        %287 = vmatpush.bf16.msra.mxu0 0
        %288 = vmatpush.bf16.msra.mxu0 0
        %289 = vmatpush.bf16.msra.mxu0 0
        %290 = vmatpush.bf16.msra.mxu0 %v277
        %291 = vmatpush.bf16.msra.mxu0 %v276
        %292 = vmatmul.bf16.gmra.mxu0 %v282
        %v293 = vpop.f32.mrf.mxu0
        %v294 = vadd.f32 %v266, %v293
        %v295 = vpop.f32.mrf.mxu0
        %296 = vdwg.mxu0
        %v297 = vpack.c.bf16 %v294, %v294
        %299 = vrot.lane.b32.xlu0 %v297, 96
        %v300 = vpop.permute.xlu0 %299
        %vm301 = vcmask 64512
        %v303 = vsel %vm301, %v297, 0
        %v306 = vsel %vm301, %v300, 0
        %308 = vmatpush.bf16.xpose.msra.mxu0 0
        %309 = vmatpush.bf16.xpose.msra.mxu0 0
        %310 = vmatpush.bf16.xpose.msra.mxu0 0
        %311 = vmatpush.bf16.xpose.msra.mxu0 0
        %312 = vmatpush.bf16.xpose.msra.mxu0 0
        %313 = vmatpush.bf16.xpose.msra.mxu0 0
        %314 = vmatpush.bf16.xpose.msra.mxu0 0
        %315 = vmatpush.bf16.xpose.msra.mxu0 %v306
        %316 = vmatmul.bf16.gmra.mxu0 %v303
        %v317 = vpop.f32.mrf.mxu0
        %v318 = vadd.f32 0.0, %v317
        %v319 = vpop.f32.mrf.mxu0
        %320 = vdwg.mxu0
        %v321 = vsel %vm301, %v318, -inf
        %322 = vmax.xlane.f32.xlu0 %v321
        %v323 = vpop.xlane.xlu0 %322
        %v324 = vsub.f32 %v318, %v323
        %v325 = vmul.f32 %v324, 1.442695
        %v326 = vpow.pop %v325
        %v327 = vsel %vm301, %v326, 0.0
        %328 = vadd.xlane.f32.xlu0 %v327
        %v329 = vpop.xlane.xlu0 %328
        %v330 = vrcp.pop %v329
        %v331 = vmul.f32 %v329, %v330
        %v332 = vsub.f32 1.0, %v331
        %v333 = vmul.f32 %v330, %v332
        %v334 = vadd.f32 %v330, %v333
        %vm335 = vweird.f32 %v329
        %vm336 = vweird.f32 %v330
        %vm337 = vmor %vm335, %vm336
        %v338 = vsel %vm337, %v330, %v334
        %v339 = vand.u32 2147483647, %v329
        %vm340 = vcmp.eq.f32.partialorder %v339, 8.507059e+37
        %v341 = vand.u32 %v329, 2147483648
        %v342 = vor.u32 1.1754944e-38, %v341
        %v343 = vsel %vm340, %v342, %v338
        %v344 = vmul.f32 %v326, %v343
        %v345 = vpack.c.bf16 %v344, %v344
        %vm346 = vcmask 60416
        %347 = vst.msk [vmem:[%s253] sm:$0xf] %vm346, %v345
        %348 = vrot.lane.b32.xlu0 %v297, 64
        %v349 = vpop.permute.xlu0 %348
        %v351 = vsel %vm301, %v345, 0
        %vm353 = vcmask 1043456
        %v355 = vsel %vm353, %v349, 0
        %357 = vmatpush.bf16.msra.mxu0 0
        %358 = vmatpush.bf16.msra.mxu0 0
        %359 = vmatpush.bf16.msra.mxu0 0
        %360 = vmatpush.bf16.msra.mxu0 0
        %361 = vmatpush.bf16.msra.mxu0 0
        %362 = vmatpush.bf16.msra.mxu0 0
        %363 = vmatpush.bf16.msra.mxu0 0
        %364 = vmatpush.bf16.msra.mxu0 %v355
        %365 = vmatmul.bf16.gmra.mxu0 %v351
        %v366 = vpop.f32.mrf.mxu0
        %v367 = vadd.f32 0.0, %v366
        %v368 = vpop.f32.mrf.mxu0
        %369 = vdwg.mxu0
        %370 = vrot.lane.b32.xlu0 %v297, 120
        %v371 = vpop.permute.xlu0 %370
        %372 = vrot.lane.b32.xlu0 %v297, 88
        %v373 = vpop.permute.xlu0 %372
        %v375 = vsel %vm301, %v371, 0
        %v378 = vsel %vm301, %v373, 0
        %380 = vmatpush.bf16.xpose.msra.mxu0 0
        %381 = vmatpush.bf16.xpose.msra.mxu0 0
        %382 = vmatpush.bf16.xpose.msra.mxu0 0
        %383 = vmatpush.bf16.xpose.msra.mxu0 0
        %384 = vmatpush.bf16.xpose.msra.mxu0 0
        %385 = vmatpush.bf16.xpose.msra.mxu0 0
        %386 = vmatpush.bf16.xpose.msra.mxu0 0
        %387 = vmatpush.bf16.xpose.msra.mxu0 %v378
        %388 = vmatmul.bf16.gmra.mxu0 %v375
        %v389 = vpop.f32.mrf.mxu0
        %v390 = vadd.f32 0.0, %v389
        %v391 = vpop.f32.mrf.mxu0
        %392 = vdwg.mxu0
        %v393 = vsel %vm301, %v390, -inf
        %394 = vmax.xlane.f32.xlu0 %v393
        %v395 = vpop.xlane.xlu0 %394
        %v396 = vsub.f32 %v390, %v395
        %v397 = vmul.f32 %v396, 1.442695
        %v398 = vpow.pop %v397
        %v399 = vsel %vm301, %v398, 0.0
        %400 = vadd.xlane.f32.xlu0 %v399
        %v401 = vpop.xlane.xlu0 %400
        %v402 = vrcp.pop %v401
        %v403 = vmul.f32 %v401, %v402
        %v404 = vsub.f32 1.0, %v403
        %v405 = vmul.f32 %v402, %v404
        %v406 = vadd.f32 %v402, %v405
        %vm407 = vweird.f32 %v401
        %vm408 = vweird.f32 %v402
        %vm409 = vmor %vm407, %vm408
        %v410 = vsel %vm409, %v402, %v406
        %v411 = vand.u32 2147483647, %v401
        %vm412 = vcmp.eq.f32.partialorder %v411, 8.507059e+37
        %v413 = vand.u32 %v401, 2147483648
        %v414 = vor.u32 1.1754944e-38, %v413
        %v415 = vsel %vm412, %v414, %v410
        %v416 = vmul.f32 %v398, %v415
        %v417 = vpack.c.bf16 %v416, %v416
        %s418 = scalar_lea.vmem %s253, 4 [#allocation4]
        %419 = vst.msk [vmem:[%s418] sm:$0xf] %vm346, %v417
        %420 = vrot.lane.b32.xlu0 %v297, 56
        %v421 = vpop.permute.xlu0 %420
        %v423 = vsel %vm301, %v417, 0
        %v426 = vsel %vm353, %v421, 0
        %428 = vmatpush.bf16.msra.mxu0 0
        %429 = vmatpush.bf16.msra.mxu0 0
        %430 = vmatpush.bf16.msra.mxu0 0
        %431 = vmatpush.bf16.msra.mxu0 0
        %432 = vmatpush.bf16.msra.mxu0 0
        %433 = vmatpush.bf16.msra.mxu0 0
        %434 = vmatpush.bf16.msra.mxu0 0
        %435 = vmatpush.bf16.msra.mxu0 %v426
        %436 = vmatmul.bf16.gmra.mxu0 %v423
        %v437 = vpop.f32.mrf.mxu0
        %v438 = vadd.f32 0.0, %v437
        %v439 = vpop.f32.mrf.mxu0
        %440 = vdwg.mxu0
        %441 = vrot.lane.b32.xlu0 %v297, 112
        %v442 = vpop.permute.xlu0 %441
        %443 = vrot.lane.b32.xlu0 %v297, 80
        %v444 = vpop.permute.xlu0 %443
        %v446 = vsel %vm301, %v442, 0
        %v449 = vsel %vm301, %v444, 0
        %451 = vmatpush.bf16.xpose.msra.mxu0 0
        %452 = vmatpush.bf16.xpose.msra.mxu0 0
        %453 = vmatpush.bf16.xpose.msra.mxu0 0
        %454 = vmatpush.bf16.xpose.msra.mxu0 0
        %455 = vmatpush.bf16.xpose.msra.mxu0 0
        %456 = vmatpush.bf16.xpose.msra.mxu0 0
        %457 = vmatpush.bf16.xpose.msra.mxu0 0
        %458 = vmatpush.bf16.xpose.msra.mxu0 %v449
        %459 = vmatmul.bf16.gmra.mxu0 %v446
        %v460 = vpop.f32.mrf.mxu0
        %v461 = vadd.f32 0.0, %v460
        %v462 = vpop.f32.mrf.mxu0
        %463 = vdwg.mxu0
        %v464 = vsel %vm301, %v461, -inf
        %465 = vmax.xlane.f32.xlu0 %v464
        %v466 = vpop.xlane.xlu0 %465
        %v467 = vsub.f32 %v461, %v466
        %v468 = vmul.f32 %v467, 1.442695
        %v469 = vpow.pop %v468
        %v470 = vsel %vm301, %v469, 0.0
        %471 = vadd.xlane.f32.xlu0 %v470
        %v472 = vpop.xlane.xlu0 %471
        %v473 = vrcp.pop %v472
        %v474 = vmul.f32 %v472, %v473
        %v475 = vsub.f32 1.0, %v474
        %v476 = vmul.f32 %v473, %v475
        %v477 = vadd.f32 %v473, %v476
        %vm478 = vweird.f32 %v472
        %vm479 = vweird.f32 %v473
        %vm480 = vmor %vm478, %vm479
        %v481 = vsel %vm480, %v473, %v477
        %v482 = vand.u32 2147483647, %v472
        %vm483 = vcmp.eq.f32.partialorder %v482, 8.507059e+37
        %v484 = vand.u32 %v472, 2147483648
        %v485 = vor.u32 1.1754944e-38, %v484
        %v486 = vsel %vm483, %v485, %v481
        %v487 = vmul.f32 %v469, %v486
        %v488 = vpack.c.bf16 %v487, %v487
        %s489 = scalar_lea.vmem %s253, 8 [#allocation4]
        %490 = vst.msk [vmem:[%s489] sm:$0xf] %vm346, %v488
        %491 = vrot.lane.b32.xlu0 %v297, 48
        %v492 = vpop.permute.xlu0 %491
        %v494 = vsel %vm301, %v488, 0
        %v497 = vsel %vm353, %v492, 0
        %499 = vmatpush.bf16.msra.mxu0 0
        %500 = vmatpush.bf16.msra.mxu0 0
        %501 = vmatpush.bf16.msra.mxu0 0
        %502 = vmatpush.bf16.msra.mxu0 0
        %503 = vmatpush.bf16.msra.mxu0 0
        %504 = vmatpush.bf16.msra.mxu0 0
        %505 = vmatpush.bf16.msra.mxu0 0
        %506 = vmatpush.bf16.msra.mxu0 %v497
        %507 = vmatmul.bf16.gmra.mxu0 %v494
        %v508 = vpop.f32.mrf.mxu0
        %v509 = vadd.f32 0.0, %v508
        %v510 = vpop.f32.mrf.mxu0
        %511 = vdwg.mxu0
        %512 = vrot.lane.b32.xlu0 %v297, 104
        %v513 = vpop.permute.xlu0 %512
        %514 = vrot.lane.b32.xlu0 %v297, 72
        %v515 = vpop.permute.xlu0 %514
        %v517 = vsel %vm301, %v513, 0
        %v520 = vsel %vm301, %v515, 0
        %522 = vmatpush.bf16.xpose.msra.mxu0 0
        %523 = vmatpush.bf16.xpose.msra.mxu0 0
        %524 = vmatpush.bf16.xpose.msra.mxu0 0
        %525 = vmatpush.bf16.xpose.msra.mxu0 0
        %526 = vmatpush.bf16.xpose.msra.mxu0 0
        %527 = vmatpush.bf16.xpose.msra.mxu0 0
        %528 = vmatpush.bf16.xpose.msra.mxu0 0
        %529 = vmatpush.bf16.xpose.msra.mxu0 %v520
        %530 = vmatmul.bf16.gmra.mxu0 %v517
        %v531 = vpop.f32.mrf.mxu0
        %v532 = vadd.f32 0.0, %v531
        %v533 = vpop.f32.mrf.mxu0
        %534 = vdwg.mxu0
        %v535 = vsel %vm301, %v532, -inf
        %536 = vmax.xlane.f32.xlu0 %v535
        %v537 = vpop.xlane.xlu0 %536
        %v538 = vsub.f32 %v532, %v537
        %v539 = vmul.f32 %v538, 1.442695
        %v540 = vpow.pop %v539
        %v541 = vsel %vm301, %v540, 0.0
        %542 = vadd.xlane.f32.xlu0 %v541
        %v543 = vpop.xlane.xlu0 %542
        %v544 = vrcp.pop %v543
        %v545 = vmul.f32 %v543, %v544
        %v546 = vsub.f32 1.0, %v545
        %v547 = vmul.f32 %v544, %v546
        %v548 = vadd.f32 %v544, %v547
        %vm549 = vweird.f32 %v543
        %vm550 = vweird.f32 %v544
        %vm551 = vmor %vm549, %vm550
        %v552 = vsel %vm551, %v544, %v548
        %v553 = vand.u32 2147483647, %v543
        %vm554 = vcmp.eq.f32.partialorder %v553, 8.507059e+37
        %v555 = vand.u32 %v543, 2147483648
        %v556 = vor.u32 1.1754944e-38, %v555
        %v557 = vsel %vm554, %v556, %v552
        %v558 = vmul.f32 %v540, %v557
        %v559 = vpack.c.bf16 %v558, %v558
        %s560 = scalar_lea.vmem %s253, 12 [#allocation4]
        %561 = vst.msk [vmem:[%s560] sm:$0xf] %vm346, %v559
        %562 = vrot.lane.b32.xlu0 %v297, 40
        %v563 = vpop.permute.xlu0 %562
        %v565 = vsel %vm301, %v559, 0
        %v568 = vsel %vm353, %v563, 0
        %570 = vmatpush.bf16.msra.mxu0 0
        %571 = vmatpush.bf16.msra.mxu0 0
        %572 = vmatpush.bf16.msra.mxu0 0
        %573 = vmatpush.bf16.msra.mxu0 0
        %574 = vmatpush.bf16.msra.mxu0 0
        %575 = vmatpush.bf16.msra.mxu0 0
        %576 = vmatpush.bf16.msra.mxu0 0
        %577 = vmatpush.bf16.msra.mxu0 %v568
        %578 = vmatmul.bf16.gmra.mxu0 %v565
        %v579 = vpop.f32.mrf.mxu0
        %v580 = vadd.f32 0.0, %v579
        %v581 = vpop.f32.mrf.mxu0
        %582 = vdwg.mxu0
        %584 = vrot.lane.b32.xlu0 %v438, 8
        %v585 = vpop.permute.xlu0 %584
        %588 = vrot.lane.b32.xlu0 %v509, 16
        %v589 = vpop.permute.xlu0 %588
        %592 = vrot.lane.b32.xlu0 %v580, 24
        %v593 = vpop.permute.xlu0 %592
        %v595 = vsel %vm301, %v367, %v585
        %vm596 = vcmask 130048
        %v597 = vsel %vm596, %v595, %v589
        %vm598 = vcmask 195584
        %v599 = vsel %vm598, %v597, %v593
        %v600 = vpack.c.bf16 %v599, %v599
        %v601 = vld [vmem:[%s3] sm:$0xf]
        %v602 = vld [vmem:[%s3 + $0x4] sm:$0xf]
        %v603 = vld [vmem:[%s3 + $0x8] sm:$0xf]
        %v604 = vld [vmem:[%s3 + $0xc] sm:$0xf]
        %v605 = vld [vmem:[%s4] sm:$0x1]
        %v607 = vperm.slane %v605, 0
        %v613 = vunpack.c.l.b16 %v601
        %v614 = vunpack.c.l.b16 %v602
        %v615 = vunpack.c.l.b16 %v603
        %v616 = vunpack.c.l.b16 %v604
        %v617 = vpack.c.b16 %v614, %v613
        %v618 = vpack.c.b16 %v616, %v615
        %v622 = vsel %vm280, %v600, 0
        %624 = vmatpush.bf16.msra.mxu0 0
        %625 = vmatpush.bf16.msra.mxu0 0
        %626 = vmatpush.bf16.msra.mxu0 0
        %627 = vmatpush.bf16.msra.mxu0 0
        %628 = vmatpush.bf16.msra.mxu0 0
        %629 = vmatpush.bf16.msra.mxu0 0
        %630 = vmatpush.bf16.msra.mxu0 %v618
        %631 = vmatpush.bf16.msra.mxu0 %v617
        %632 = vmatmul.bf16.gmra.mxu0 %v622
        %v633 = vpop.f32.mrf.mxu0
        %v634 = vadd.f32 %v607, %v633
        %v635 = vpop.f32.mrf.mxu0
        %636 = vdwg.mxu0
        %637 = vst.msk [vmem:[%s246] sm:$0xff] %vm280, %v634
        %s638 = sand.u32 %s142, 1
        %s639 = scalar_lea.sflag [#allocation3], %s638
        %s640 = sand.u32 %s142, 1
        %s641 = smul.addr %s640, 8
        %s642 = scalar_lea.vmem [#allocation2], %s641
        %s643 = sand.u32 %s168, 1
        %s644 = scalar_lea.sflag [#allocation5], %s643
        %s645 = sand.u32 %s168, 1
        %s646 = smul.addr %s645, 16
        %s647 = scalar_lea.vmem [#allocation4], %s646
        // Predicated region
        $region41: #{self_attention.1} parent=39 // pred_check
          %p648 = pneg %p152
        $region42: #{self_attention.1} parent=39 // pred_check_branch
          %650 = sbr.rel (%p648) target = $region44
        $region43: #{self_attention.1} parent=39 // pred_region
          %652 = vsyncadd %s639, 0
          %s653 = smul.addr %s24, 8
          %s654 = scalar_lea.hbm %s5, %s653
          %s656 = sshll.u32 %s642, 4
          %s657 = int_to_ptr.vmem [resolvable:$true] %s656
          %s658 = sshll.u32 %s654, 4
          %s659 = int_to_ptr.hbm [resolvable:$true] %s658
          %661 = dma.vmem_to_hbm [thread:$0]  %s657, 128, %s659, %s639
        $region44: #{self_attention.1} parent=39 // pred_fallthru
          _
        // Predicated region
        $region45: #{self_attention.1} parent=39 // pred_check
          %p662 = pneg %p178
        $region46: #{self_attention.1} parent=39 // pred_check_branch
          %664 = sbr.rel (%p662) target = $region48
        $region47: #{self_attention.1} parent=39 // pred_region
          %666 = vsyncadd %s644, 0
          %s667 = smul.addr %s24, 4
          %s668 = smul.addr %s667, 4
          %s669 = scalar_lea.hbm %s6, %s668
          %s670 = sshll.u32 %s647, 4
          %s671 = int_to_ptr.vmem [resolvable:$true] %s670
          %s672 = sshll.u32 %s669, 4
          %s673 = int_to_ptr.hbm [resolvable:$true] %s672
          %678 = dma.vmem_to_hbm [thread:$0]  %s671, 256, %s673, %s644, 64, 64, 4
        $region48: #{self_attention.1} parent=39 // pred_fallthru
          _
      $region40: #{self_attention.1} parent=5 // pred_fallthru
        _
      %p679 = scmp.le.s32.totalorder 2, %s19
      // Predicated region
      $region49: #{self_attention.1} parent=5 // pred_check
        %p680 = pneg %p679
      $region50: #{self_attention.1} parent=5 // pred_check_branch
        %682 = sbr.rel (%p680) target = $region52
      $region51: #{self_attention.1} parent=5 // pred_region
        %s683 = ssub.s32 %s19, 2
        // Predicated region
        $region53: #{self_attention.1} parent=51 // pred_check
          %p684 = pneg %p158
        $region54: #{self_attention.1} parent=51 // pred_check_branch
          %686 = sbr.rel (%p684) target = $region56
        $region55: #{self_attention.1} parent=51 // pred_region
          %s687 = sand.u32 %s143, 1
          %s688 = scalar_lea.sflag [#allocation3], %s687
          %s689 = sand.u32 %s143, 1
          %s690 = smul.addr %s689, 8
          %s691 = scalar_lea.vmem [#allocation2], %s690
          %693 = dma.done %s688, 128
        $region56: #{self_attention.1} parent=51 // pred_fallthru
          _
        // Predicated region
        $region57: #{self_attention.1} parent=51 // pred_check
          %p694 = pneg %p184
        $region58: #{self_attention.1} parent=51 // pred_check_branch
          %696 = sbr.rel (%p694) target = $region60
        $region59: #{self_attention.1} parent=51 // pred_region
          %s697 = sand.u32 %s169, 1
          %s698 = scalar_lea.sflag [#allocation5], %s697
          %s699 = sand.u32 %s169, 1
          %s700 = smul.addr %s699, 16
          %s701 = scalar_lea.vmem [#allocation4], %s700
          %703 = dma.done %s698, 256
        $region60: #{self_attention.1} parent=51 // pred_fallthru
          _
      $region52: #{self_attention.1} parent=5 // pred_fallthru
        _
    $region6: #{self_attention.1} parent=1 // loop_footer
      %s23 = sadd.s32 1, %s19
    $region7: #{self_attention.1} parent=1 // loop_footer_branch
      %18 = sbr.rel target = $region3
    $region8: #{self_attention.1} parent=1 // loop_exit
      _
    %704 = vsyncpa [#allocation3], 1
    %s705 = scalar_lea.sflag [#allocation3], 1
    %706 = vsyncpa %s705, 1
    %707 = vsyncpa [#allocation5], 1
    %s708 = scalar_lea.sflag [#allocation5], 1
    %709 = vsyncpa %s708, 1

</llo_original>
